<compile_context>
chip_gen: v6e
topology: v6e:2x2x1
jax: 0.10.0
libtpu: 0.0.40
codegen_flags: <defaults>
</compile_context>

<pallas_src>
import numpy as np

import jax
import jax.numpy as jnp
from jax import lax
from jax.experimental import pallas as pl
from jax.experimental.pallas import tpu as pltpu


# ----------------------------------------------------------------------------- #
# Static network description (matches Res_HDC.forward)
# ----------------------------------------------------------------------------- #
_NUM_CONVS = 10
_CONV_DILS = [1, 1, 1, 1, 2, 1, 1, 3, 1, 1]          # dilation of each conv
_CONV_RELU = [True] * 9 + [False]                    # conv_out has no BN / ReLU
_SEG_COUNTS = [1, 1, 1, 2, 1, 1, 3, 1, 1, 4]         # input segments per conv


def _conv_cins(ci, co):
    return [ci, co, co, ci + co, co, co, ci + 2 * co, co, co, ci + 3 * co]


def _conv_input_ranges(ci, co):
    """Channel ranges (within each conv's own Cin) of its concat segments.

    Must match the kernel's segment order:
      conv3 input = cat([h1, x]); conv6 = cat([h1, x, h2]); conv9 = cat([h1, x, h2, h3]).
    """
    return [
        [(0, ci)],                                                     # conv0: x
        [(0, co)], [(0, co)],                                          # conv1-2
        [(0, co), (co, co + ci)],                                      # conv3: [h1, x]
        [(0, co)], [(0, co)],                                          # conv4-5
        [(0, co), (co, co + ci), (co + ci, 2 * co + ci)],              # conv6: [h1, x, h2]
        [(0, co)], [(0, co)],                                          # conv7-8
        [(0, co), (co, co + ci), (co + ci, 2 * co + ci),
         (2 * co + ci, 3 * co + ci)],                                  # conv9: [h1, x, h2, h3]
    ]


# ----------------------------------------------------------------------------- #
# pltpu.roll direction probe (makes the tap shifts independent of roll convention)
# ----------------------------------------------------------------------------- #
def _detect_roll_sign():
    """Return sign so that pltpu.roll(a, (sign*s) % n, axis=-1)[..., p] == a[..., (p+s) % n]."""
    def probe_kernel(x_ref, o_ref):
        o_ref[...] = pltpu.roll(x_ref[...], 1, axis=1)

    x = jnp.tile(jnp.arange(128, dtype=jnp.float32)[None, :], (8, 1))
    y = pl.pallas_call(
        probe_kernel,
        out_shape=jax.ShapeDtypeStruct((8, 128), jnp.float32),
    )(x)
    v = float(y[0, 0])
    if v == 127.0:      # np.roll semantics: out[p] = in[p - shift]
        return -1
    if v == 1.0:        # reversed semantics: out[p] = in[p + shift]
        return 1
    raise RuntimeError(f"Unexpected pltpu.roll probe value: {v}")


# ----------------------------------------------------------------------------- #
# Precomputed 'same'-padding boundary masks (one row per (dilation, tap))
# ----------------------------------------------------------------------------- #
def _build_tap_masks(H, W, dilations):
    S = H * W
    hh, ww = np.meshgrid(np.arange(H), np.arange(W), indexing="ij")
    hh = hh.reshape(-1)
    ww = ww.reshape(-1)
    rows = []
    for d in dilations:
        for t in range(9):
            ky, kx = divmod(t, 3)
            dy, dx = (ky - 1) * d, (kx - 1) * d
            valid = ((hh + dy >= 0) & (hh + dy < H) &
                     (ww + dx >= 0) & (ww + dx < W))
            rows.append(valid.astype(np.float32))
    return jnp.asarray(np.stack(rows, axis=0))        # (len(dilations)*9, S)


# ----------------------------------------------------------------------------- #
# Fused Pallas kernel
# ----------------------------------------------------------------------------- #
def _build_res_hdc_kernel(H, W, dil_index, roll_sign, n_w):
    S = H * W

    def kernel(*refs):
        x_ref = refs[0]                     # (1, cp, S)  padded input channels
        mask_ref = refs[1]                  # (n_dils*9, S) {0,1} boundary masks
        w_refs = refs[2:2 + n_w]            # each (co, 9*cseg)
        b_ref = refs[2 + n_w]               # (10, co, 1) folded biases
        o_ref = refs[3 + n_w]               # (1, co, S)

        def im2col(a, d):
            """(C, S) activation -> (9*C, S) patch matrix for a 3x3 dilated conv."""
            base = dil_index[d] * 9
            pieces = []
            for t in range(9):
                ky, kx = divmod(t, 3)
                dy, dx = (ky - 1) * d, (kx - 1) * d
                s = dy * W + dx
                if s == 0:                                   # center tap, always valid
                    p = a
                else:
                    p = pltpu.roll(a, (roll_sign * s) % S, axis=1)
                    m = mask_ref[pl.ds(base + t, 1), :]      # (1, S) zero-padding mask
                    p = p * m
                pieces.append(p)
            return jnp.concatenate(pieces, axis=0)

        def conv(segs, w_start, c):
            d = _CONV_DILS[c]
            acc = None
            for j, a in enumerate(segs):
                patches = im2col(a, d)
                part = jnp.dot(w_refs[w_start + j][...], patches,
                               preferred_element_type=jnp.float32)
                acc = part if acc is None else acc + part
            y = acc + b_ref[c]                               # (co, S) + (co, 1)
            if _CONV_RELU[c]:
                y = jnp.maximum(y, 0.0)
            return y

        w_off = [0]
        for sc in _SEG_COUNTS:
            w_off.append(w_off[-1] + sc)

        xp = x_ref[0].astype(jnp.float32)                    # (cp, S)

        h = conv([xp], w_off[0], 0)                          # block 1
        h = conv([h], w_off[1], 1)
        h1 = conv([h], w_off[2], 2)
        h = conv([h1, xp], w_off[3], 3)                      # block 2 (input cat([h1, x]))
        h = conv([h], w_off[4], 4)
        h2 = conv([h], w_off[5], 5)
        h = conv([h1, xp, h2], w_off[6], 6)                  # block 3 (input cat([h1, x, h2]))
        h = conv([h], w_off[7], 7)
        h3 = conv([h], w_off[8], 8)
        out = conv([h1, xp, h2, h3], w_off[9], 9)            # conv_out (cat([h1, x, h2, h3]))

        o_ref[0] = out.astype(o_ref.dtype)

    return kernel


def res_hdc_pallas(x_nchw, w_segs, b_all, roll_sign):
    """Fused Res_HDC forward.  NCHW in -> NCHW out."""
    N, ci, H, W = x_nchw.shape
    co = b_all.shape[1]
    assert co % 8 == 0, "out_channel must be a multiple of 8 (sublane tiling)"
    S = H * W
    cp = ((ci + 7) // 8) * 8                                 # pad input channels to 8

    x_flat = x_nchw.reshape(N, ci, S).astype(jnp.float32)
    if cp != ci:
        x_flat = jnp.pad(x_flat, ((0, 0), (0, cp - ci), (0, 0)))

    dils = sorted(set(_CONV_DILS))
    dil_index = {d: i for i, d in enumerate(dils)}
    masks = _build_tap_masks(H, W, dils)

    n_w = len(w_segs)
    kernel = _build_res_hdc_kernel(H, W, dil_index, roll_sign, n_w)

    in_specs = [pl.BlockSpec((1, cp, S), lambda n: (n, 0, 0)),
                pl.BlockSpec(masks.shape, lambda n: (0, 0))]
    for ws in w_segs:
        in_specs.append(pl.BlockSpec(ws.shape, lambda n: (0, 0)))
    in_specs.append(pl.BlockSpec(b_all.shape, lambda n: (0, 0, 0)))

    out_flat = pl.pallas_call(
        kernel,
        out_shape=jax.ShapeDtypeStruct((N, co, S), jnp.float32),
        grid=(N,),
        in_specs=in_specs,
        out_specs=pl.BlockSpec((1, co, S), lambda n: (n, 0, 0)),
        compiler_params=pltpu.CompilerParams(
            dimension_semantics=("parallel",)),
    )(x_flat, masks, *w_segs, b_all)

    return out_flat.reshape(N, co, H, W)


# ----------------------------------------------------------------------------- #
# Parameters (PyTorch layout) + host-side folding for the kernel
# ----------------------------------------------------------------------------- #
def make_res_hdc_raw_params(key, in_channel, out_channel):
    ci, co = in_channel, out_channel
    cins = _conv_cins(ci, co)
    keys = jax.random.split(key, _NUM_CONVS)
    raw = []
    for c in range(_NUM_CONVS):
        ks = jax.random.split(keys[c], 6)
        w = 0.1 * jax.random.normal(ks[0], (co, cins[c], 3, 3), jnp.float32)  # OIHW
        b = 0.05 * jax.random.normal(ks[1], (co,), jnp.float32)
        if c < _NUM_CONVS - 1:                                # conv_out has no BatchNorm
            gamma = 1.0 + 0.1 * jax.random.normal(ks[2], (co,), jnp.float32)
            beta = 0.1 * jax.random.normal(ks[3], (co,), jnp.float32)
            mean = 0.1 * jax.random.normal(ks[4], (co,), jnp.float32)
            var = 0.5 + jax.random.uniform(ks[5], (co,), jnp.float32)
            bn = (gamma, beta, mean, var)
        else:
            bn = None
        raw.append(dict(w=w, b=b, bn=bn, dil=_CONV_DILS[c], relu=_CONV_RELU[c]))
    return raw


def fold_params_for_kernel(raw, in_channel, out_channel):
    """Fold BN (inference) into weights/bias, split each conv's weight along the
    concat segments of its input, zero-pad segments to a multiple of 8 channels,
    and flatten taps to match the kernel's im2col row order (row = tap*cseg + ch)."""
    eps = 1e-5
    ci, co = in_channel, out_channel
    ranges = _conv_input_ranges(ci, co)
    w_segs, b_rows = [], []
    for rp, rngs in zip(raw, ranges):
        w, b = rp["w"], rp["b"]
        if rp["bn"] is not None:
            gamma, beta, mean, var = rp["bn"]
            scale = gamma * jax.lax.rsqrt(var + eps)
            bias = (b - mean) * scale + beta
        else:
            scale = jnp.ones_like(b)
            bias = b
        wf = w * scale[:, None, None, None]                   # (co, cin, 3, 3)
        for lo, hi in rngs:
            ws = wf[:, lo:hi]
            pad = (-(hi - lo)) % 8
            if pad:
                ws = jnp.pad(ws, ((0, 0), (0, pad), (0, 0), (0, 0)))
            ws = jnp.transpose(ws, (0, 2, 3, 1)).reshape(co, -1)   # (co, 9*cseg)
            w_segs.append(ws)
        b_rows.append(bias[:, None])
    return tuple(w_segs), jnp.stack(b_rows, axis=0)           # (10, co, 1)


# ----------------------------------------------------------------------------- #
# Pure-JAX reference (validates the fused kernel + folding)
# ----------------------------------------------------------------------------- #
def res_hdc_reference(x, raw):
    def conv_bn_relu(h, rp):
        d = rp["dil"]
        y = lax.conv_general_dilated(
            h, rp["w"], window_strides=(1, 1),
            padding=[(d, d), (d, d)], rhs_dilation=(d, d),
            dimension_numbers=("NCHW", "OIHW", "NCHW"),
            precision=lax.Precision.HIGHEST)
        y = y + rp["b"][None, :, None, None]
        if rp["bn"] is not None:
            g, beta, mu, var = rp["bn"]
            inv = g * jax.lax.rsqrt(var + 1e-5)
            y = (y - mu[None, :, None, None]) * inv[None, :, None, None] \
                + beta[None, :, None, None]
        if rp["relu"]:
            y = jnp.maximum(y, 0.0)
        return y

    h = x
    for i in range(3):
        h = conv_bn_relu(h, raw[i])
    c1 = jnp.concatenate([h, x], axis=1)
    h = c1
    for i in range(3, 6):
        h = conv_bn_relu(h, raw[i])
    c2 = jnp.concatenate([c1, h], axis=1)
    h = c2
    for i in range(6, 9):
        h = conv_bn_relu(h, raw[i])
    c3 = jnp.concatenate([c2, h], axis=1)
    return conv_bn_relu(c3, raw[9])


# ----------------------------------------------------------------------------- #
if __name__ == "__main__":
    key = jax.random.PRNGKey(0)
    k_param, k_x = jax.random.split(key)

    batch, in_channel, out_channel, H, W = 2, 4, 8, 16, 16
    raw = make_res_hdc_raw_params(k_param, in_channel, out_channel)
    w_segs, b_all = fold_params_for_kernel(raw, in_channel, out_channel)
    x = jax.random.normal(k_x, (batch, in_channel, H, W), jnp.float32)

    roll_sign = _detect_roll_sign()

    fwd = jax.jit(lambda xx: res_hdc_pallas(xx, w_segs, b_all, roll_sign))
    out = fwd(x)
    jax.block_until_ready(out)

    assert out.shape == (batch, out_channel, H, W), out.shape
    assert bool(jnp.all(jnp.isfinite(out)))

    ref = res_hdc_reference(x, raw)
    max_err = float(jnp.max(jnp.abs(out - ref)))
    assert max_err < 1e-2, f"Pallas output mismatch vs reference (max abs err {max_err})"
    print("KERNEL_OK")
</pallas_src>

<mosaic_0001>
module attributes {stable_mosaic.version = 11 : i64} {
  func.func @probe_kernel(%arg0: memref<8x128xf32, #tpu.memory_space<vmem>>, %arg1: memref<8x128xf32, #tpu.memory_space<vmem>>) attributes {dimension_semantics = [], scalar_prefetch = 0 : i64, scratch_operands = 0 : i64, tpu.core_type = #tpu.core_type<tc>} {
    %c0 = arith.constant 0 : index
    %c0_0 = arith.constant 0 : index
    %0 = vector.load %arg0[%c0, %c0_0] : memref<8x128xf32, #tpu.memory_space<vmem>>, vector<8x128xf32>
    %c1_i32 = arith.constant 1 : i32
    %1 = tpu.dynamic_rotate %0 by %c1_i32 dim 1 : vector<8x128xf32>, i32 -> vector<8x128xf32>
    %c0_1 = arith.constant 0 : index
    %c0_2 = arith.constant 0 : index
    %2 = vector.load %arg1[%c0_1, %c0_2] : memref<8x128xf32, #tpu.memory_space<vmem>>, vector<8x128xf32>
    tpu.vector_store %arg1[%c0_1, %c0_2], %1 {strides = array<i32>} : memref<8x128xf32, #tpu.memory_space<vmem>>, vector<8x128xf32>,
    return
  }
}

</mosaic_0001>

<llo_original>
// kernel: tpu_custom_call.1
$region0: #{tpu_custom_call.1}
  #allocation0 [shape = 'u32[]', space=smem, size = 0x4, offset = 0x4, fixed_abs, tag = 'smem constant byte address 0x4 - core index']
  #allocation1 [shape = 'u32[144,128]{1,0:T(1,128)}', space=vmem, size = 0x12000, scoped, tag = 'internal scratch']
  %s0 = inlined_call_operand.hbm [shape: f32[8,128], index: 0, kind: input, shape index: {}]
  %s1 = inlined_call_operand.hbm [shape: f32[8,128], index: 1, kind: output, shape index: {}]
  %s2 = sld [smem:[#allocation0]]
  $region18: #{tpu_custom_call.1} parent=0
    _
  %s4 = ssub.s32 1, %s2
  %s5 = scalar_select 0, %s4, %s2
  $region1: #{tpu_custom_call.1} parent=0
    #allocation2 [shape = 'u8[4096]{0}', space=vmem, size = 0x1000, scoped, tag = 'input window, operand 0, single buffered']
    #allocation3 [shape = 's32[1]{0}', space=sflag, size = 0x4, scoped, tag = 'scoped memory for tpu_custom_call.1']
    #allocation4 [shape = 's32[1]{0}', space=sflag, size = 0x4, scoped, tag = 'scoped memory for tpu_custom_call.1']
    #allocation5 [shape = 'u8[4096]{0}', space=vmem, size = 0x1000, scoped, tag = 'output window, operand 0, single buffered']
    %6 = vsyncpa [#allocation3], 0
    %7 = vsyncpa [#allocation4], 0
    // Predicated region
    $region2: #{tpu_custom_call.1} parent=1 // pred_check
      _
    $region3: #{tpu_custom_call.1} parent=1 // pred_check_branch
      %9 = sbr.rel (0) target = $region5
    $region4: #{tpu_custom_call.1} parent=1 // pred_region
      %s11 = ssub.s32 128, 128
      %12 = vsyncadd [#allocation3], %s11
      %s14 = sshll.u32 [#allocation2], 4
      %s15 = int_to_ptr.vmem [resolvable:$true] %s14
      %17 = dma.hbm_to_vmem [thread:$0]  %s0, 128, %s15, [#allocation3]
    $region5: #{tpu_custom_call.1} parent=1 // pred_fallthru
      _
    // Predicated region
    $region6: #{tpu_custom_call.1} parent=1 // pred_check
      _
    $region7: #{tpu_custom_call.1} parent=1 // pred_check_branch
      %19 = sbr.rel (0) target = $region9
    $region8: #{tpu_custom_call.1} parent=1 // pred_region
      %20 = dma.done [#allocation3], 128
    $region9: #{tpu_custom_call.1} parent=1 // pred_fallthru
      _
    %v21 = vld [vmem:[#allocation2] sm:$0xff]
    %22 = vrot.lane.b32.xlu0 %v21, 1
    %v23 = vpop.permute.xlu0 %22
    %24 = vst [vmem:[#allocation5] sm:$0xff] %v23
    // Predicated region
    $region10: #{tpu_custom_call.1} parent=1 // pred_check
      _
    $region11: #{tpu_custom_call.1} parent=1 // pred_check_branch
      %26 = sbr.rel (0) target = $region13
    $region12: #{tpu_custom_call.1} parent=1 // pred_region
      %s28 = ssub.s32 128, 128
      %29 = vsyncadd [#allocation4], %s28
      %s31 = sshll.u32 [#allocation5], 4
      %s32 = int_to_ptr.vmem [resolvable:$true] %s31
      %34 = dma.vmem_to_hbm [thread:$0]  %s32, 128, %s1, [#allocation4]
    $region13: #{tpu_custom_call.1} parent=1 // pred_fallthru
      _
    // Predicated region
    $region14: #{tpu_custom_call.1} parent=1 // pred_check
      _
    $region15: #{tpu_custom_call.1} parent=1 // pred_check_branch
      %36 = sbr.rel (0) target = $region17
    $region16: #{tpu_custom_call.1} parent=1 // pred_region
      %37 = dma.done [#allocation4], 128
    $region17: #{tpu_custom_call.1} parent=1 // pred_fallthru
      _
    %38 = vsyncpa [#allocation3], 1
    %39 = vsyncpa [#allocation4], 1

</llo_original>
